<compile_context>
chip_gen: v7x
topology: tpu7x:2x2x1
jax: 0.10.0
libtpu: 0.0.40
codegen_flags: <defaults>
</compile_context>

<pallas_src>
import jax
import jax.numpy as jnp
from jax.experimental import pallas as pl
from jax.experimental.pallas import tpu as pltpu

HIDDEN = 32
INPUT = 7
IN_PAD = 8  # input features padded 7 -> 8 (zero column; zero weight row)


# ----------------------------------------------------------------------------
# Kernel
# ----------------------------------------------------------------------------
def stock_forecast_lstm_kernel(
    x_ref,       # (seq*B, IN_PAD) f32   time-major, batch- & feature-padded input
    wih0f_ref,   # (IN_PAD, 8H)    f32   layer-0 input weights in fused/interleaved lanes
    bfull_ref,   # (1, 8H)         f32   fused bias row (b0 in layer-0 lanes, b1 in layer-1 lanes)
    wblock_ref,  # (2H, 8H)        f32   [[W_hh0 | W_ih1], [0 | W_hh1]], lanes interleaved by layer
    wdrain_ref,  # (2H, 4H)        f32   [W_ih1; W_hh1] layer-1 only (gate order i,f,o,g)
    b1d_ref,     # (1, 4H)         f32   layer-1 bias (gate order i,f,o,g)
    wout_ref,    # (1, H)          f32   linear weight as a row
    bout_ref,    # (1, 1)          f32
    out_ref,     # (B, 1)          f32
):
    H = HIDDEN
    H2 = 2 * H          # fused state width [layer0 | layer1]
    SIG = 6 * H         # sigmoid lanes (i,f,o of both layers) in the 8H gate block
    B = out_ref.shape[0]
    seq = x_ref.shape[0] // B

    # Hoist all weight loads out of the recurrence.
    wblock = wblock_ref[...]

    # Per-timestep additive term, computed ONCE (one lane-dense matmul + add):
    #   addend[t*B:(t+1)*B] = [ 0.5*(x_t Wih0 + b0)_{i,f,o}, (x_t Wih0 + b0)_g
    #                         | 0.5*b1_{i,f,o},              b1_g ]
    addend = (
        jnp.dot(x_ref[...], wih0f_ref[...], preferred_element_type=jnp.float32)
        + bfull_ref[...]
    )  # (seq*B, 8H)

    def fused_step(gates, ccat):
        """Fused two-layer LSTM gate update.

        gates: (B, 8H) pre-activations; sigmoid lanes are already pre-scaled by
               0.5 (weights/bias folded), so sigmoid(z) = 0.5*tanh(scaled) + 0.5.
        ccat:  (B, 2H) [c0 | c1].
        Returns (hcat, ccat), both (B, 2H) in [layer0 | layer1] layout.
        """
        t = jnp.tanh(gates)                 # ONE EUP launch for all 8 gates
        s = 0.5 * t[:, :SIG] + 0.5          # sigmoid fixup on i/f/o lanes (VPU fma)
        i = s[:, 0 * H2:1 * H2]
        f = s[:, 1 * H2:2 * H2]
        o = s[:, 2 * H2:3 * H2]
        g = t[:, SIG:]
        c_new = f * ccat + i * g
        h_new = o * jnp.tanh(c_new)
        return h_new, c_new

    zeros2 = jnp.zeros((B, H2), jnp.float32)

    # t = 0: hcat = ccat = 0, so the fused gates are exactly addend[0:B].
    # The layer-0 half is the exact first LSTM step; the layer-1 half has not
    # run yet under the one-step skew, so mask it back to zero (once, off-loop).
    h_raw, c_raw = fused_step(addend[0:B, :], zeros2)
    lane = jax.lax.broadcasted_iota(jnp.int32, (B, H2), 1)
    keep_l0 = lane < H
    hcat = jnp.where(keep_l0, h_raw, 0.0)
    ccat = jnp.where(keep_l0, c_raw, 0.0)

    # Skewed, fully unrolled recurrence: iteration t computes layer-0 step t and
    # layer-1 step t-1.  Both cells read the OLD hcat, so one (B,2H)x(2H,8H) dot
    # plus one full-width add is the entire per-step matmul work.
    for t in range(1, seq):
        gates = (
            jnp.dot(hcat, wblock, preferred_element_type=jnp.float32)
            + addend[t * B:(t + 1) * B, :]
        )
        hcat, ccat = fused_step(gates, ccat)

    # Drain: layer-1 step seq-1 only, with a narrow (2H, 4H) layer-1-only RHS.
    gates1 = (
        jnp.dot(hcat, wdrain_ref[...], preferred_element_type=jnp.float32)
        + b1d_ref[...]
    )  # (B, 4H)
    t1 = jnp.tanh(gates1)
    s1 = 0.5 * t1[:, :3 * H] + 0.5
    i1 = s1[:, 0 * H:1 * H]
    f1 = s1[:, 1 * H:2 * H]
    o1 = s1[:, 2 * H:3 * H]
    g1 = t1[:, 3 * H:]
    c1 = f1 * ccat[:, H:] + i1 * g1
    h1 = o1 * jnp.tanh(c1)

    # Dropout (eval) = identity; Linear(32, 1) as VPU multiply + lane reduction
    # (avoids an N=1 MXU matmul's fill/drain latency at the tail).
    pred = jnp.sum(h1 * wout_ref[...], axis=1, keepdims=True) + bout_ref[...]
    out_ref[...] = pred.astype(out_ref.dtype)


@jax.jit
def stock_forecast_lstm(x, packed):
    """x: (batch, seq, INPUT) batch_first, like PyTorch. Returns (batch, 1)."""
    batch, seq, d_in = x.shape
    B = ((batch + 7) // 8) * 8                       # pad batch to f32 sublane multiple
    x = x.astype(jnp.float32)
    x_tm = jnp.transpose(x, (1, 0, 2))                               # (seq, batch, d_in)
    x_tm = jnp.pad(x_tm, ((0, 0), (0, B - batch), (0, IN_PAD - d_in)))
    x2d = x_tm.reshape(seq * B, IN_PAD)                              # (seq*B, IN_PAD)

    vmem = pl.BlockSpec(memory_space=pltpu.MemorySpace.VMEM)
    out = pl.pallas_call(
        stock_forecast_lstm_kernel,
        out_shape=jax.ShapeDtypeStruct((B, 1), jnp.float32),
        in_specs=[vmem] * 8,
        out_specs=vmem,
    )(
        x2d,
        packed["wih0f"], packed["bfull"], packed["wblock"],
        packed["wdrain"], packed["b1d"], packed["wout_row"], packed["bout"],
    )
    return out[:batch]


# ----------------------------------------------------------------------------
# Parameter handling: canonical (PyTorch-equivalent) params + kernel packing.
# ----------------------------------------------------------------------------
def init_params(key):
    """Canonical params: transposed vs PyTorch ((in, 4H)), gate order (i, f, g, o)."""
    stdv = 1.0 / jnp.sqrt(jnp.float32(HIDDEN))
    keys = jax.random.split(key, 12)

    def u(k, shape):
        return jax.random.uniform(k, shape, jnp.float32, -stdv, stdv)

    return {
        "wih0": u(keys[0], (INPUT, 4 * HIDDEN)),
        "whh0": u(keys[1], (HIDDEN, 4 * HIDDEN)),
        "b0": u(keys[2], (1, 4 * HIDDEN)) + u(keys[3], (1, 4 * HIDDEN)),
        "wih1": u(keys[4], (HIDDEN, 4 * HIDDEN)),
        "whh1": u(keys[5], (HIDDEN, 4 * HIDDEN)),
        "b1": u(keys[6], (1, 4 * HIDDEN)) + u(keys[7], (1, 4 * HIDDEN)),
        "wout": u(keys[8], (HIDDEN, 1)),
        "bout": u(keys[9], (1, 1)),
    }


def _split_gates(w):
    """Split (..., 4H) in PyTorch gate order (i, f, g, o) into a dict."""
    H = HIDDEN
    return {
        "i": w[..., 0 * H:1 * H],
        "f": w[..., 1 * H:2 * H],
        "g": w[..., 2 * H:3 * H],
        "o": w[..., 3 * H:4 * H],
    }


def _interleave_cols(w0, w1, scale_ifo=0.5):
    """Fused/interleaved kernel column layout [i0|i1, f0|f1, o0|o1, g0|g1].

    i/f/o columns pre-scaled by `scale_ifo` so sigmoid(z) = scale*tanh(z*scale)... +
    concretely sigmoid(z) = 0.5*tanh(z/2) + 0.5 with the /2 folded into weights.
    """
    g0 = _split_gates(w0)
    g1 = _split_gates(w1)
    return jnp.concatenate(
        [
            scale_ifo * g0["i"], scale_ifo * g1["i"],
            scale_ifo * g0["f"], scale_ifo * g1["f"],
            scale_ifo * g0["o"], scale_ifo * g1["o"],
            g0["g"], g1["g"],
        ],
        axis=-1,
    )


def _perm_ifog(w, scale_ifo=0.5):
    """Single-layer kernel column layout [i, f, o, g] with i/f/o pre-scaled."""
    g = _split_gates(w)
    return jnp.concatenate(
        [scale_ifo * g["i"], scale_ifo * g["f"], scale_ifo * g["o"], g["g"]], axis=-1
    )


def pack_params(p):
    """Convert canonical params to the kernel layout (interleave, scale, pad, fuse)."""
    H = HIDDEN
    zeros_h = jnp.zeros((H, 4 * H), jnp.float32)
    zeros_in = jnp.zeros((IN_PAD, 4 * H), jnp.float32)

    wih0_pad = jnp.pad(p["wih0"], ((0, IN_PAD - INPUT), (0, 0)))          # (8, 4H)
    wih0f = _interleave_cols(wih0_pad, zeros_in)                           # (8, 8H)
    bfull = _interleave_cols(p["b0"], p["b1"])                             # (1, 8H)
    wblock = jnp.concatenate(
        [_interleave_cols(p["whh0"], p["wih1"]),
         _interleave_cols(zeros_h, p["whh1"])],
        axis=0,
    )                                                                      # (2H, 8H)
    wdrain = jnp.concatenate([_perm_ifog(p["wih1"]), _perm_ifog(p["whh1"])], axis=0)  # (2H, 4H)
    b1d = _perm_ifog(p["b1"])                                              # (1, 4H)

    return {
        "wih0f": wih0f,
        "bfull": bfull,
        "wblock": wblock,
        "wdrain": wdrain,
        "b1d": b1d,
        "wout_row": p["wout"].T,                                           # (1, H)
        "bout": p["bout"],
    }


def reference_forward(x, params):
    """Pure-JAX reference of the PyTorch forward (eval mode), canonical params."""
    batch, seq, _ = x.shape
    h0 = jnp.zeros((batch, HIDDEN), jnp.float32)
    c0 = jnp.zeros((batch, HIDDEN), jnp.float32)
    h1 = jnp.zeros((batch, HIDDEN), jnp.float32)
    c1 = jnp.zeros((batch, HIDDEN), jnp.float32)

    def cell(xt, h, c, wih, whh, b):
        gates = xt @ wih + h @ whh + b
        i = jax.nn.sigmoid(gates[:, 0 * HIDDEN:1 * HIDDEN])
        f = jax.nn.sigmoid(gates[:, 1 * HIDDEN:2 * HIDDEN])
        g = jnp.tanh(gates[:, 2 * HIDDEN:3 * HIDDEN])
        o = jax.nn.sigmoid(gates[:, 3 * HIDDEN:4 * HIDDEN])
        c_new = f * c + i * g
        h_new = o * jnp.tanh(c_new)
        return h_new, c_new

    for t in range(seq):
        xt = x[:, t, :].astype(jnp.float32)
        h0, c0 = cell(xt, h0, c0, params["wih0"], params["whh0"], params["b0"])
        h1, c1 = cell(h0, h1, c1, params["wih1"], params["whh1"], params["b1"])

    return h1 @ params["wout"] + params["bout"]


if __name__ == "__main__":
    key = jax.random.PRNGKey(0)
    pkey, xkey = jax.random.split(key)

    batch, seq = 4, 8
    params = init_params(pkey)
    packed = pack_params(params)   # one-time conversion to kernel layout
    x = jax.random.normal(xkey, (batch, seq, INPUT), jnp.float32)

    out = stock_forecast_lstm(x, packed)
    out = jax.block_until_ready(out)

    ref = reference_forward(x, params)
    assert out.shape == (batch, 1), out.shape
    assert jnp.allclose(out, ref, atol=1e-4, rtol=1e-4), (out, ref)

    print("KERNEL_OK")
</pallas_src>

<mosaic_0001>
module attributes {stable_mosaic.version = 11 : i64} {
  func.func @stock_forecast_lstm_kernel(%arg0: memref<64x8xf32, #tpu.memory_space<vmem>>, %arg1: memref<8x256xf32, #tpu.memory_space<vmem>>, %arg2: memref<1x256xf32, #tpu.memory_space<vmem>>, %arg3: memref<64x256xf32, #tpu.memory_space<vmem>>, %arg4: memref<64x128xf32, #tpu.memory_space<vmem>>, %arg5: memref<1x128xf32, #tpu.memory_space<vmem>>, %arg6: memref<1x32xf32, #tpu.memory_space<vmem>>, %arg7: memref<1x1xf32, #tpu.memory_space<vmem>>, %arg8: memref<8x1xf32, #tpu.memory_space<vmem>>) attributes {dimension_semantics = [], scalar_prefetch = 0 : i64, scratch_operands = 0 : i64, tpu.core_type = #tpu.core_type<tc>} {
    %c0 = arith.constant 0 : index
    %c0_0 = arith.constant 0 : index
    %0 = vector.load %arg3[%c0, %c0_0] : memref<64x256xf32, #tpu.memory_space<vmem>>, vector<64x256xf32>
    %c0_1 = arith.constant 0 : index
    %c0_2 = arith.constant 0 : index
    %1 = vector.load %arg0[%c0_1, %c0_2] : memref<64x8xf32, #tpu.memory_space<vmem>>, vector<64x8xf32>
    %c0_3 = arith.constant 0 : index
    %c0_4 = arith.constant 0 : index
    %2 = vector.load %arg1[%c0_3, %c0_4] : memref<8x256xf32, #tpu.memory_space<vmem>>, vector<8x256xf32>
    %cst = arith.constant dense<0.000000e+00> : vector<64x256xf32>
    %3 = tpu.matmul %1, %2, %cst {dimension_numbers = #tpu.dot_dimension_numbers<[1], [0], [0], [1], [0, 0, 1, 1], [], []>} : vector<64x8xf32>, vector<8x256xf32>, vector<64x256xf32> -> vector<64x256xf32>
    %c0_5 = arith.constant 0 : index
    %c0_6 = arith.constant 0 : index
    %4 = vector.load %arg2[%c0_5, %c0_6] : memref<1x256xf32, #tpu.memory_space<vmem>>, vector<1x256xf32>
    %5 = vector.broadcast %4 : vector<1x256xf32> to vector<64x256xf32>
    %6 = arith.addf %3, %5 : vector<64x256xf32>
    %cst_7 = arith.constant 0.000000e+00 : f32
    %7 = vector.broadcast %cst_7 : f32 to vector<8x64xf32>
    %8 = vector.extract_strided_slice %6 {offsets = [0, 0], sizes = [8, 256], strides = [1, 1]} : vector<64x256xf32> to vector<8x256xf32>
    %9 = math.tanh %8 : vector<8x256xf32>
    %10 = vector.extract_strided_slice %9 {offsets = [0, 0], sizes = [8, 192], strides = [1, 1]} : vector<8x256xf32> to vector<8x192xf32>
    %cst_8 = arith.constant 5.000000e-01 : f32
    %11 = vector.broadcast %cst_8 : f32 to vector<8x192xf32>
    %12 = arith.mulf %11, %10 : vector<8x192xf32>
    %cst_9 = arith.constant 5.000000e-01 : f32
    %13 = vector.broadcast %cst_9 : f32 to vector<8x192xf32>
    %14 = arith.addf %12, %13 : vector<8x192xf32>
    %15 = vector.extract_strided_slice %14 {offsets = [0, 0], sizes = [8, 64], strides = [1, 1]} : vector<8x192xf32> to vector<8x64xf32>
    %16 = vector.extract_strided_slice %14 {offsets = [0, 64], sizes = [8, 64], strides = [1, 1]} : vector<8x192xf32> to vector<8x64xf32>
    %17 = vector.extract_strided_slice %14 {offsets = [0, 128], sizes = [8, 64], strides = [1, 1]} : vector<8x192xf32> to vector<8x64xf32>
    %18 = vector.extract_strided_slice %9 {offsets = [0, 192], sizes = [8, 64], strides = [1, 1]} : vector<8x256xf32> to vector<8x64xf32>
    %19 = arith.mulf %16, %7 : vector<8x64xf32>
    %20 = arith.mulf %15, %18 : vector<8x64xf32>
    %21 = arith.addf %19, %20 : vector<8x64xf32>
    %22 = math.tanh %21 : vector<8x64xf32>
    %23 = arith.mulf %17, %22 : vector<8x64xf32>
    %24 = tpu.iota {dimensions = array<i32: 1>} : vector<8x64xi32>
    %c32_i32 = arith.constant 32 : i32
    %25 = vector.broadcast %c32_i32 : i32 to vector<8x64xi32>
    %26 = arith.cmpi slt, %24, %25 : vector<8x64xi32>
    %cst_10 = arith.constant 0.000000e+00 : f32
    %27 = vector.broadcast %cst_10 : f32 to vector<8x64xf32>
    %28 = arith.select %26, %23, %27 : vector<8x64xi1>, vector<8x64xf32>
    %cst_11 = arith.constant 0.000000e+00 : f32
    %29 = vector.broadcast %cst_11 : f32 to vector<8x64xf32>
    %30 = arith.select %26, %21, %29 : vector<8x64xi1>, vector<8x64xf32>
    %cst_12 = arith.constant dense<0.000000e+00> : vector<8x256xf32>
    %31 = tpu.matmul %28, %0, %cst_12 {dimension_numbers = #tpu.dot_dimension_numbers<[1], [0], [0], [1], [0, 0, 1, 1], [], []>} : vector<8x64xf32>, vector<64x256xf32>, vector<8x256xf32> -> vector<8x256xf32>
    %32 = vector.extract_strided_slice %6 {offsets = [8, 0], sizes = [8, 256], strides = [1, 1]} : vector<64x256xf32> to vector<8x256xf32>
    %33 = arith.addf %31, %32 : vector<8x256xf32>
    %34 = math.tanh %33 : vector<8x256xf32>
    %35 = vector.extract_strided_slice %34 {offsets = [0, 0], sizes = [8, 192], strides = [1, 1]} : vector<8x256xf32> to vector<8x192xf32>
    %cst_13 = arith.constant 5.000000e-01 : f32
    %36 = vector.broadcast %cst_13 : f32 to vector<8x192xf32>
    %37 = arith.mulf %36, %35 : vector<8x192xf32>
    %cst_14 = arith.constant 5.000000e-01 : f32
    %38 = vector.broadcast %cst_14 : f32 to vector<8x192xf32>
    %39 = arith.addf %37, %38 : vector<8x192xf32>
    %40 = vector.extract_strided_slice %39 {offsets = [0, 0], sizes = [8, 64], strides = [1, 1]} : vector<8x192xf32> to vector<8x64xf32>
    %41 = vector.extract_strided_slice %39 {offsets = [0, 64], sizes = [8, 64], strides = [1, 1]} : vector<8x192xf32> to vector<8x64xf32>
    %42 = vector.extract_strided_slice %39 {offsets = [0, 128], sizes = [8, 64], strides = [1, 1]} : vector<8x192xf32> to vector<8x64xf32>
    %43 = vector.extract_strided_slice %34 {offsets = [0, 192], sizes = [8, 64], strides = [1, 1]} : vector<8x256xf32> to vector<8x64xf32>
    %44 = arith.mulf %41, %30 : vector<8x64xf32>
    %45 = arith.mulf %40, %43 : vector<8x64xf32>
    %46 = arith.addf %44, %45 : vector<8x64xf32>
    %47 = math.tanh %46 : vector<8x64xf32>
    %48 = arith.mulf %42, %47 : vector<8x64xf32>
    %cst_15 = arith.constant dense<0.000000e+00> : vector<8x256xf32>
    %49 = tpu.matmul %48, %0, %cst_15 {dimension_numbers = #tpu.dot_dimension_numbers<[1], [0], [0], [1], [0, 0, 1, 1], [], []>} : vector<8x64xf32>, vector<64x256xf32>, vector<8x256xf32> -> vector<8x256xf32>
    %50 = vector.extract_strided_slice %6 {offsets = [16, 0], sizes = [8, 256], strides = [1, 1]} : vector<64x256xf32> to vector<8x256xf32>
    %51 = arith.addf %49, %50 : vector<8x256xf32>
    %52 = math.tanh %51 : vector<8x256xf32>
    %53 = vector.extract_strided_slice %52 {offsets = [0, 0], sizes = [8, 192], strides = [1, 1]} : vector<8x256xf32> to vector<8x192xf32>
    %cst_16 = arith.constant 5.000000e-01 : f32
    %54 = vector.broadcast %cst_16 : f32 to vector<8x192xf32>
    %55 = arith.mulf %54, %53 : vector<8x192xf32>
    %cst_17 = arith.constant 5.000000e-01 : f32
    %56 = vector.broadcast %cst_17 : f32 to vector<8x192xf32>
    %57 = arith.addf %55, %56 : vector<8x192xf32>
    %58 = vector.extract_strided_slice %57 {offsets = [0, 0], sizes = [8, 64], strides = [1, 1]} : vector<8x192xf32> to vector<8x64xf32>
    %59 = vector.extract_strided_slice %57 {offsets = [0, 64], sizes = [8, 64], strides = [1, 1]} : vector<8x192xf32> to vector<8x64xf32>
    %60 = vector.extract_strided_slice %57 {offsets = [0, 128], sizes = [8, 64], strides = [1, 1]} : vector<8x192xf32> to vector<8x64xf32>
    %61 = vector.extract_strided_slice %52 {offsets = [0, 192], sizes = [8, 64], strides = [1, 1]} : vector<8x256xf32> to vector<8x64xf32>
    %62 = arith.mulf %59, %46 : vector<8x64xf32>
    %63 = arith.mulf %58, %61 : vector<8x64xf32>
    %64 = arith.addf %62, %63 : vector<8x64xf32>
    %65 = math.tanh %64 : vector<8x64xf32>
    %66 = arith.mulf %60, %65 : vector<8x64xf32>
    %cst_18 = arith.constant dense<0.000000e+00> : vector<8x256xf32>
    %67 = tpu.matmul %66, %0, %cst_18 {dimension_numbers = #tpu.dot_dimension_numbers<[1], [0], [0], [1], [0, 0, 1, 1], [], []>} : vector<8x64xf32>, vector<64x256xf32>, vector<8x256xf32> -> vector<8x256xf32>
    %68 = vector.extract_strided_slice %6 {offsets = [24, 0], sizes = [8, 256], strides = [1, 1]} : vector<64x256xf32> to vector<8x256xf32>
    %69 = arith.addf %67, %68 : vector<8x256xf32>
    %70 = math.tanh %69 : vector<8x256xf32>
    %71 = vector.extract_strided_slice %70 {offsets = [0, 0], sizes = [8, 192], strides = [1, 1]} : vector<8x256xf32> to vector<8x192xf32>
    %cst_19 = arith.constant 5.000000e-01 : f32
    %72 = vector.broadcast %cst_19 : f32 to vector<8x192xf32>
    %73 = arith.mulf %72, %71 : vector<8x192xf32>
    %cst_20 = arith.constant 5.000000e-01 : f32
    %74 = vector.broadcast %cst_20 : f32 to vector<8x192xf32>
    %75 = arith.addf %73, %74 : vector<8x192xf32>
    %76 = vector.extract_strided_slice %75 {offsets = [0, 0], sizes = [8, 64], strides = [1, 1]} : vector<8x192xf32> to vector<8x64xf32>
    %77 = vector.extract_strided_slice %75 {offsets = [0, 64], sizes = [8, 64], strides = [1, 1]} : vector<8x192xf32> to vector<8x64xf32>
    %78 = vector.extract_strided_slice %75 {offsets = [0, 128], sizes = [8, 64], strides = [1, 1]} : vector<8x192xf32> to vector<8x64xf32>
    %79 = vector.extract_strided_slice %70 {offsets = [0, 192], sizes = [8, 64], strides = [1, 1]} : vector<8x256xf32> to vector<8x64xf32>
    %80 = arith.mulf %77, %64 : vector<8x64xf32>
    %81 = arith.mulf %76, %79 : vector<8x64xf32>
    %82 = arith.addf %80, %81 : vector<8x64xf32>
    %83 = math.tanh %82 : vector<8x64xf32>
    %84 = arith.mulf %78, %83 : vector<8x64xf32>
    %cst_21 = arith.constant dense<0.000000e+00> : vector<8x256xf32>
    %85 = tpu.matmul %84, %0, %cst_21 {dimension_numbers = #tpu.dot_dimension_numbers<[1], [0], [0], [1], [0, 0, 1, 1], [], []>} : vector<8x64xf32>, vector<64x256xf32>, vector<8x256xf32> -> vector<8x256xf32>
    %86 = vector.extract_strided_slice %6 {offsets = [32, 0], sizes = [8, 256], strides = [1, 1]} : vector<64x256xf32> to vector<8x256xf32>
    %87 = arith.addf %85, %86 : vector<8x256xf32>
    %88 = math.tanh %87 : vector<8x256xf32>
    %89 = vector.extract_strided_slice %88 {offsets = [0, 0], sizes = [8, 192], strides = [1, 1]} : vector<8x256xf32> to vector<8x192xf32>
    %cst_22 = arith.constant 5.000000e-01 : f32
    %90 = vector.broadcast %cst_22 : f32 to vector<8x192xf32>
    %91 = arith.mulf %90, %89 : vector<8x192xf32>
    %cst_23 = arith.constant 5.000000e-01 : f32
    %92 = vector.broadcast %cst_23 : f32 to vector<8x192xf32>
    %93 = arith.addf %91, %92 : vector<8x192xf32>
    %94 = vector.extract_strided_slice %93 {offsets = [0, 0], sizes = [8, 64], strides = [1, 1]} : vector<8x192xf32> to vector<8x64xf32>
    %95 = vector.extract_strided_slice %93 {offsets = [0, 64], sizes = [8, 64], strides = [1, 1]} : vector<8x192xf32> to vector<8x64xf32>
    %96 = vector.extract_strided_slice %93 {offsets = [0, 128], sizes = [8, 64], strides = [1, 1]} : vector<8x192xf32> to vector<8x64xf32>
    %97 = vector.extract_strided_slice %88 {offsets = [0, 192], sizes = [8, 64], strides = [1, 1]} : vector<8x256xf32> to vector<8x64xf32>
    %98 = arith.mulf %95, %82 : vector<8x64xf32>
    %99 = arith.mulf %94, %97 : vector<8x64xf32>
    %100 = arith.addf %98, %99 : vector<8x64xf32>
    %101 = math.tanh %100 : vector<8x64xf32>
    %102 = arith.mulf %96, %101 : vector<8x64xf32>
    %cst_24 = arith.constant dense<0.000000e+00> : vector<8x256xf32>
    %103 = tpu.matmul %102, %0, %cst_24 {dimension_numbers = #tpu.dot_dimension_numbers<[1], [0], [0], [1], [0, 0, 1, 1], [], []>} : vector<8x64xf32>, vector<64x256xf32>, vector<8x256xf32> -> vector<8x256xf32>
    %104 = vector.extract_strided_slice %6 {offsets = [40, 0], sizes = [8, 256], strides = [1, 1]} : vector<64x256xf32> to vector<8x256xf32>
    %105 = arith.addf %103, %104 : vector<8x256xf32>
    %106 = math.tanh %105 : vector<8x256xf32>
    %107 = vector.extract_strided_slice %106 {offsets = [0, 0], sizes = [8, 192], strides = [1, 1]} : vector<8x256xf32> to vector<8x192xf32>
    %cst_25 = arith.constant 5.000000e-01 : f32
    %108 = vector.broadcast %cst_25 : f32 to vector<8x192xf32>
    %109 = arith.mulf %108, %107 : vector<8x192xf32>
    %cst_26 = arith.constant 5.000000e-01 : f32
    %110 = vector.broadcast %cst_26 : f32 to vector<8x192xf32>
    %111 = arith.addf %109, %110 : vector<8x192xf32>
    %112 = vector.extract_strided_slice %111 {offsets = [0, 0], sizes = [8, 64], strides = [1, 1]} : vector<8x192xf32> to vector<8x64xf32>
    %113 = vector.extract_strided_slice %111 {offsets = [0, 64], sizes = [8, 64], strides = [1, 1]} : vector<8x192xf32> to vector<8x64xf32>
    %114 = vector.extract_strided_slice %111 {offsets = [0, 128], sizes = [8, 64], strides = [1, 1]} : vector<8x192xf32> to vector<8x64xf32>
    %115 = vector.extract_strided_slice %106 {offsets = [0, 192], sizes = [8, 64], strides = [1, 1]} : vector<8x256xf32> to vector<8x64xf32>
    %116 = arith.mulf %113, %100 : vector<8x64xf32>
    %117 = arith.mulf %112, %115 : vector<8x64xf32>
    %118 = arith.addf %116, %117 : vector<8x64xf32>
    %119 = math.tanh %118 : vector<8x64xf32>
    %120 = arith.mulf %114, %119 : vector<8x64xf32>
    %cst_27 = arith.constant dense<0.000000e+00> : vector<8x256xf32>
    %121 = tpu.matmul %120, %0, %cst_27 {dimension_numbers = #tpu.dot_dimension_numbers<[1], [0], [0], [1], [0, 0, 1, 1], [], []>} : vector<8x64xf32>, vector<64x256xf32>, vector<8x256xf32> -> vector<8x256xf32>
    %122 = vector.extract_strided_slice %6 {offsets = [48, 0], sizes = [8, 256], strides = [1, 1]} : vector<64x256xf32> to vector<8x256xf32>
    %123 = arith.addf %121, %122 : vector<8x256xf32>
    %124 = math.tanh %123 : vector<8x256xf32>
    %125 = vector.extract_strided_slice %124 {offsets = [0, 0], sizes = [8, 192], strides = [1, 1]} : vector<8x256xf32> to vector<8x192xf32>
    %cst_28 = arith.constant 5.000000e-01 : f32
    %126 = vector.broadcast %cst_28 : f32 to vector<8x192xf32>
    %127 = arith.mulf %126, %125 : vector<8x192xf32>
    %cst_29 = arith.constant 5.000000e-01 : f32
    %128 = vector.broadcast %cst_29 : f32 to vector<8x192xf32>
    %129 = arith.addf %127, %128 : vector<8x192xf32>
    %130 = vector.extract_strided_slice %129 {offsets = [0, 0], sizes = [8, 64], strides = [1, 1]} : vector<8x192xf32> to vector<8x64xf32>
    %131 = vector.extract_strided_slice %129 {offsets = [0, 64], sizes = [8, 64], strides = [1, 1]} : vector<8x192xf32> to vector<8x64xf32>
    %132 = vector.extract_strided_slice %129 {offsets = [0, 128], sizes = [8, 64], strides = [1, 1]} : vector<8x192xf32> to vector<8x64xf32>
    %133 = vector.extract_strided_slice %124 {offsets = [0, 192], sizes = [8, 64], strides = [1, 1]} : vector<8x256xf32> to vector<8x64xf32>
    %134 = arith.mulf %131, %118 : vector<8x64xf32>
    %135 = arith.mulf %130, %133 : vector<8x64xf32>
    %136 = arith.addf %134, %135 : vector<8x64xf32>
    %137 = math.tanh %136 : vector<8x64xf32>
    %138 = arith.mulf %132, %137 : vector<8x64xf32>
    %cst_30 = arith.constant dense<0.000000e+00> : vector<8x256xf32>
    %139 = tpu.matmul %138, %0, %cst_30 {dimension_numbers = #tpu.dot_dimension_numbers<[1], [0], [0], [1], [0, 0, 1, 1], [], []>} : vector<8x64xf32>, vector<64x256xf32>, vector<8x256xf32> -> vector<8x256xf32>
    %140 = vector.extract_strided_slice %6 {offsets = [56, 0], sizes = [8, 256], strides = [1, 1]} : vector<64x256xf32> to vector<8x256xf32>
    %141 = arith.addf %139, %140 : vector<8x256xf32>
    %142 = math.tanh %141 : vector<8x256xf32>
    %143 = vector.extract_strided_slice %142 {offsets = [0, 0], sizes = [8, 192], strides = [1, 1]} : vector<8x256xf32> to vector<8x192xf32>
    %cst_31 = arith.constant 5.000000e-01 : f32
    %144 = vector.broadcast %cst_31 : f32 to vector<8x192xf32>
    %145 = arith.mulf %144, %143 : vector<8x192xf32>
    %cst_32 = arith.constant 5.000000e-01 : f32
    %146 = vector.broadcast %cst_32 : f32 to vector<8x192xf32>
    %147 = arith.addf %145, %146 : vector<8x192xf32>
    %148 = vector.extract_strided_slice %147 {offsets = [0, 0], sizes = [8, 64], strides = [1, 1]} : vector<8x192xf32> to vector<8x64xf32>
    %149 = vector.extract_strided_slice %147 {offsets = [0, 64], sizes = [8, 64], strides = [1, 1]} : vector<8x192xf32> to vector<8x64xf32>
    %150 = vector.extract_strided_slice %147 {offsets = [0, 128], sizes = [8, 64], strides = [1, 1]} : vector<8x192xf32> to vector<8x64xf32>
    %151 = vector.extract_strided_slice %142 {offsets = [0, 192], sizes = [8, 64], strides = [1, 1]} : vector<8x256xf32> to vector<8x64xf32>
    %152 = arith.mulf %149, %136 : vector<8x64xf32>
    %153 = arith.mulf %148, %151 : vector<8x64xf32>
    %154 = arith.addf %152, %153 : vector<8x64xf32>
    %155 = math.tanh %154 : vector<8x64xf32>
    %156 = arith.mulf %150, %155 : vector<8x64xf32>
    %c0_33 = arith.constant 0 : index
    %c0_34 = arith.constant 0 : index
    %157 = vector.load %arg4[%c0_33, %c0_34] : memref<64x128xf32, #tpu.memory_space<vmem>>, vector<64x128xf32>
    %cst_35 = arith.constant dense<0.000000e+00> : vector<8x128xf32>
    %158 = tpu.matmul %156, %157, %cst_35 {dimension_numbers = #tpu.dot_dimension_numbers<[1], [0], [0], [1], [0, 0, 1, 1], [], []>} : vector<8x64xf32>, vector<64x128xf32>, vector<8x128xf32> -> vector<8x128xf32>
    %c0_36 = arith.constant 0 : index
    %c0_37 = arith.constant 0 : index
    %159 = vector.load %arg5[%c0_36, %c0_37] : memref<1x128xf32, #tpu.memory_space<vmem>>, vector<1x128xf32>
    %160 = vector.broadcast %159 : vector<1x128xf32> to vector<8x128xf32>
    %161 = arith.addf %158, %160 : vector<8x128xf32>
    %162 = math.tanh %161 : vector<8x128xf32>
    %163 = vector.extract_strided_slice %162 {offsets = [0, 0], sizes = [8, 96], strides = [1, 1]} : vector<8x128xf32> to vector<8x96xf32>
    %cst_38 = arith.constant 5.000000e-01 : f32
    %164 = vector.broadcast %cst_38 : f32 to vector<8x96xf32>
    %165 = arith.mulf %164, %163 : vector<8x96xf32>
    %cst_39 = arith.constant 5.000000e-01 : f32
    %166 = vector.broadcast %cst_39 : f32 to vector<8x96xf32>
    %167 = arith.addf %165, %166 : vector<8x96xf32>
    %168 = vector.extract_strided_slice %167 {offsets = [0, 0], sizes = [8, 32], strides = [1, 1]} : vector<8x96xf32> to vector<8x32xf32>
    %169 = vector.extract_strided_slice %167 {offsets = [0, 32], sizes = [8, 32], strides = [1, 1]} : vector<8x96xf32> to vector<8x32xf32>
    %170 = vector.extract_strided_slice %167 {offsets = [0, 64], sizes = [8, 32], strides = [1, 1]} : vector<8x96xf32> to vector<8x32xf32>
    %171 = vector.extract_strided_slice %162 {offsets = [0, 96], sizes = [8, 32], strides = [1, 1]} : vector<8x128xf32> to vector<8x32xf32>
    %172 = vector.extract_strided_slice %154 {offsets = [0, 32], sizes = [8, 32], strides = [1, 1]} : vector<8x64xf32> to vector<8x32xf32>
    %173 = arith.mulf %169, %172 : vector<8x32xf32>
    %174 = arith.mulf %168, %171 : vector<8x32xf32>
    %175 = arith.addf %173, %174 : vector<8x32xf32>
    %176 = math.tanh %175 : vector<8x32xf32>
    %177 = arith.mulf %170, %176 : vector<8x32xf32>
    %c0_40 = arith.constant 0 : index
    %c0_41 = arith.constant 0 : index
    %178 = vector.load %arg6[%c0_40, %c0_41] : memref<1x32xf32, #tpu.memory_space<vmem>>, vector<1x32xf32>
    %179 = vector.broadcast %178 : vector<1x32xf32> to vector<8x32xf32>
    %180 = arith.mulf %177, %179 : vector<8x32xf32>
    %cst_42 = arith.constant dense<0.000000e+00> : vector<8xf32>
    %181 = vector.multi_reduction <add>, %180, %cst_42 [1] : vector<8x32xf32> to vector<8xf32>
    %182 = vector.shape_cast %181 : vector<8xf32> to vector<8x1xf32>
    %c0_43 = arith.constant 0 : index
    %c0_44 = arith.constant 0 : index
    %183 = vector.load %arg7[%c0_43, %c0_44] : memref<1x1xf32, #tpu.memory_space<vmem>>, vector<1x1xf32>
    %184 = vector.broadcast %183 : vector<1x1xf32> to vector<8x1xf32>
    %185 = arith.addf %182, %184 : vector<8x1xf32>
    %c0_45 = arith.constant 0 : index
    %c0_46 = arith.constant 0 : index
    %186 = vector.load %arg8[%c0_45, %c0_46] : memref<8x1xf32, #tpu.memory_space<vmem>>, vector<8x1xf32>
    tpu.vector_store %arg8[%c0_45, %c0_46], %185 {strides = array<i32>} : memref<8x1xf32, #tpu.memory_space<vmem>>, vector<8x1xf32>,
    return
  }
}

</mosaic_0001>

<llo_original>
// kernel: stock_forecast_lstm.1
$region0: #{stock_forecast_lstm.1}
  #allocation0 [shape = 'u32[]', space=smem, size = 0x4, offset = 0x4, fixed_abs, tag = 'smem constant byte address 0x4 - core index']
  #allocation1 [shape = 'u32[144,128]{1,0:T(1,128)}', space=vmem, size = 0x12000, scoped, tag = 'internal scratch']
  #allocation2 [shape = 'f32[1,1]{1,0:T(1,128)S(1)}', space=vmem, size = 0x200, scoped, tag = 'scoped memory for stock_forecast_lstm.1']
  %s0 = inlined_call_operand.vmem [shape: f32[64,8], index: 0, kind: input, shape index: {}]
  %s1 = inlined_call_operand.vmem [shape: f32[8,256], index: 1, kind: input, shape index: {}]
  %s2 = inlined_call_operand.vmem [shape: f32[1,256], index: 2, kind: input, shape index: {}]
  %s3 = inlined_call_operand.vmem [shape: f32[64,256], index: 3, kind: input, shape index: {}]
  %s4 = inlined_call_operand.hbm [shape: f32[64,128], index: 4, kind: input, shape index: {}]
  %s5 = inlined_call_operand.vmem [shape: f32[1,128], index: 5, kind: input, shape index: {}]
  %s6 = inlined_call_operand.vmem [shape: f32[1,32], index: 6, kind: input, shape index: {}]
  %s7 = inlined_call_operand.<no memory space> [shape: f32[1,1], index: 7, kind: input, shape index: {}]
  %s8 = inlined_call_operand.vmem [shape: f32[8,1], index: 8, kind: output, shape index: {}]
  %s9 = sld [smem:[#allocation0]]
  $region46: #{stock_forecast_lstm.1} parent=0
    _
  %s11 = ssub.s32 1, %s9
  %s12 = scalar_select 0, %s11, %s9
  %v13 = vstv %s7
  %14 = vst [vmem:[#allocation2] sm:$0x1] %v13
  $region1: #{stock_forecast_lstm.1} parent=0
    #allocation3 [shape = 'u8[32768]{0}', space=vmem, size = 0x8000, scoped, tag = 'input window, operand 4, single buffered']
    #allocation4 [shape = 's32[1]{0}', space=sflag, size = 0x4, scoped, tag = 'scoped memory for stock_forecast_lstm.1']
    %15 = vsyncpa [#allocation4], 0
    // Predicated region
    $region2: #{stock_forecast_lstm.1} parent=1 // pred_check
      _
    $region3: #{stock_forecast_lstm.1} parent=1 // pred_check_branch
      %17 = sbr.rel (0) target = $region5
    $region4: #{stock_forecast_lstm.1} parent=1 // pred_region
      _
    $region5: #{stock_forecast_lstm.1} parent=1 // pred_fallthru
      _
    // Predicated region
    $region6: #{stock_forecast_lstm.1} parent=1 // pred_check
      _
    $region7: #{stock_forecast_lstm.1} parent=1 // pred_check_branch
      %19 = sbr.rel (0) target = $region9
    $region8: #{stock_forecast_lstm.1} parent=1 // pred_region
      _
    $region9: #{stock_forecast_lstm.1} parent=1 // pred_fallthru
      _
    // Predicated region
    $region10: #{stock_forecast_lstm.1} parent=1 // pred_check
      _
    $region11: #{stock_forecast_lstm.1} parent=1 // pred_check_branch
      %21 = sbr.rel (0) target = $region13
    $region12: #{stock_forecast_lstm.1} parent=1 // pred_region
      _
    $region13: #{stock_forecast_lstm.1} parent=1 // pred_fallthru
      _
    // Predicated region
    $region14: #{stock_forecast_lstm.1} parent=1 // pred_check
      _
    $region15: #{stock_forecast_lstm.1} parent=1 // pred_check_branch
      %23 = sbr.rel (0) target = $region17
    $region16: #{stock_forecast_lstm.1} parent=1 // pred_region
      _
    $region17: #{stock_forecast_lstm.1} parent=1 // pred_fallthru
      _
    // Predicated region
    $region18: #{stock_forecast_lstm.1} parent=1 // pred_check
      _
    $region19: #{stock_forecast_lstm.1} parent=1 // pred_check_branch
      %25 = sbr.rel (0) target = $region21
    $region20: #{stock_forecast_lstm.1} parent=1 // pred_region
      %s27 = ssub.s32 1024, 1024
      %28 = vsyncadd [#allocation4], %s27
      %s29 = sshll.u32 [#allocation3], 4
      %s30 = int_to_ptr.vmem [resolvable:$true] %s29
      %35 = dma.hbm_to_vmem [thread:$0]  %s4, 1024, %s30, [#allocation4], 128, 128, 8
    $region21: #{stock_forecast_lstm.1} parent=1 // pred_fallthru
      _
    // Predicated region
    $region22: #{stock_forecast_lstm.1} parent=1 // pred_check
      _
    $region23: #{stock_forecast_lstm.1} parent=1 // pred_check_branch
      %37 = sbr.rel (0) target = $region25
    $region24: #{stock_forecast_lstm.1} parent=1 // pred_region
      _
    $region25: #{stock_forecast_lstm.1} parent=1 // pred_fallthru
      _
    // Predicated region
    $region26: #{stock_forecast_lstm.1} parent=1 // pred_check
      _
    $region27: #{stock_forecast_lstm.1} parent=1 // pred_check_branch
      %39 = sbr.rel (0) target = $region29
    $region28: #{stock_forecast_lstm.1} parent=1 // pred_region
      _
    $region29: #{stock_forecast_lstm.1} parent=1 // pred_fallthru
      _
    // Predicated region
    $region30: #{stock_forecast_lstm.1} parent=1 // pred_check
      _
    $region31: #{stock_forecast_lstm.1} parent=1 // pred_check_branch
      %41 = sbr.rel (0) target = $region33
    $region32: #{stock_forecast_lstm.1} parent=1 // pred_region
      _
    $region33: #{stock_forecast_lstm.1} parent=1 // pred_fallthru
      _
    // Predicated region
    $region34: #{stock_forecast_lstm.1} parent=1 // pred_check
      _
    $region35: #{stock_forecast_lstm.1} parent=1 // pred_check_branch
      %43 = sbr.rel (0) target = $region37
    $region36: #{stock_forecast_lstm.1} parent=1 // pred_region
      %44 = dma.done [#allocation4], 1024
    $region37: #{stock_forecast_lstm.1} parent=1 // pred_fallthru
      _
    %v45 = vld [vmem:[%s3] sm:$0xff]
    %v46 = vld [vmem:[%s3 + $0x8] sm:$0xff]
    %v47 = vld [vmem:[%s3 + $0x10] sm:$0xff]
    %v48 = vld [vmem:[%s3 + $0x18] sm:$0xff]
    %v49 = vld [vmem:[%s3 + $0x20] sm:$0xff]
    %v50 = vld [vmem:[%s3 + $0x28] sm:$0xff]
    %v51 = vld [vmem:[%s3 + $0x30] sm:$0xff]
    %v52 = vld [vmem:[%s3 + $0x38] sm:$0xff]
    %v53 = vld [vmem:[%s3 + $0x40] sm:$0xff]
    %v54 = vld [vmem:[%s3 + $0x48] sm:$0xff]
    %v55 = vld [vmem:[%s3 + $0x50] sm:$0xff]
    %v56 = vld [vmem:[%s3 + $0x58] sm:$0xff]
    %v57 = vld [vmem:[%s3 + $0x60] sm:$0xff]
    %v58 = vld [vmem:[%s3 + $0x68] sm:$0xff]
    %v59 = vld [vmem:[%s3 + $0x70] sm:$0xff]
    %v60 = vld [vmem:[%s3 + $0x78] sm:$0xff]
    %v61 = vld [vmem:[%s0] sm:$0xff]
    %v62 = vld [vmem:[%s0 + $0x8] sm:$0xff]
    %v63 = vld [vmem:[%s0 + $0x10] sm:$0xff]
    %v64 = vld [vmem:[%s0 + $0x18] sm:$0xff]
    %v65 = vld [vmem:[%s0 + $0x20] sm:$0xff]
    %v66 = vld [vmem:[%s0 + $0x28] sm:$0xff]
    %v67 = vld [vmem:[%s0 + $0x30] sm:$0xff]
    %v68 = vld [vmem:[%s0 + $0x38] sm:$0xff]
    %v69 = vld [vmem:[%s1] sm:$0xff]
    %v70 = vld [vmem:[%s1 + $0x8] sm:$0xff]
    %v71 = vld [vmem:[%s2] sm:$0x3]
    %v73 = vlaneseq
    %v74 = vshrl.u32 %v73, 7
    %v75 = vsub.s32 0, %v74
    %v76 = vrot.slane %v71, %v75
    %v77 = vlaneseq
    %v78 = vshrl.u32 %v77, 7
    %v79 = vsub.s32 1, %v78
    %v80 = vrot.slane %v71, %v79
    %vm83 = vcmask 64512
    %v85 = vsel %vm83, %v61, 0
    %v88 = vsel %vm83, %v62, 0
    %v91 = vsel %vm83, %v63, 0
    %v94 = vsel %vm83, %v64, 0
    %v97 = vsel %vm83, %v65, 0
    %v100 = vsel %vm83, %v66, 0
    %v103 = vsel %vm83, %v67, 0
    %v106 = vsel %vm83, %v68, 0
    %108 = vmatprep.subr.mxu0 %v70
    %109 = vmatpush1.msra.mxu0 %v69
    %110 = vmatprep.subr.mxu0 0.0
    %111 = vmatpush1.msra.mxu0 0.0
    %112 = vmatprep.subr.mxu0 0.0
    %113 = vmatpush1.msra.mxu0 0.0
    %114 = vmatprep.subr.mxu0 0.0
    %115 = vmatpush1.msra.mxu0 0.0
    %116 = vmatprep.subr.mxu0 0.0
    %117 = vmatpush1.msra.mxu0 0.0
    %118 = vmatprep.subr.mxu0 0.0
    %119 = vmatpush1.msra.mxu0 0.0
    %120 = vmatprep.subr.mxu0 0.0
    %121 = vmatpush1.msra.mxu0 0.0
    %122 = vmatprep.subr.mxu0 0.0
    %123 = vmatpush1.msra.mxu0 0.0
    %124 = vmatprep.subr.mxu0 0.0
    %125 = vmatpush1.msra.mxu0 0.0
    %126 = vmatprep.subr.mxu0 0.0
    %127 = vmatpush1.msra.mxu0 0.0
    %128 = vmatprep.subr.mxu0 0.0
    %129 = vmatpush1.msra.mxu0 0.0
    %130 = vmatprep.subr.mxu0 0.0
    %131 = vmatpush1.msra.mxu0 0.0
    %132 = vmatprep.subr.mxu0 0.0
    %133 = vmatpush1.msra.mxu0 0.0
    %134 = vmatprep.subr.mxu0 0.0
    %135 = vmatpush1.msra.mxu0 0.0
    %136 = vmatprep.subr.mxu0 0.0
    %137 = vmatpush1.msra.mxu0 0.0
    %138 = vmatprep.subr.mxu0 0.0
    %139 = vmatpush1.msra.mxu0 0.0
    %140 = vmatprep.subr.mxu0 0.0
    %141 = vmatpush1.msra.mxu0 0.0
    %142 = vmatprep.subr.mxu0 0.0
    %143 = vmatpush1.msra.mxu0 0.0
    %144 = vmatprep.subr.mxu0 0.0
    %145 = vmatpush1.msra.mxu0 0.0
    %146 = vmatprep.subr.mxu0 0.0
    %147 = vmatpush1.msra.mxu0 0.0
    %148 = vmatprep.subr.mxu0 0.0
    %149 = vmatpush1.msra.mxu0 0.0
    %150 = vmatprep.subr.mxu0 0.0
    %151 = vmatpush1.msra.mxu0 0.0
    %152 = vmatprep.subr.mxu0 0.0
    %153 = vmatpush1.msra.mxu0 0.0
    %154 = vmatprep.subr.mxu0 0.0
    %155 = vmatpush1.msra.mxu0 0.0
    %156 = vmatprep.subr.mxu0 0.0
    %157 = vmatpush1.msra.mxu0 0.0
    %158 = vmatprep.subr.mxu0 0.0
    %159 = vmatpush1.msra.mxu0 0.0
    %160 = vmatprep.subr.mxu0 0.0
    %161 = vmatpush1.msra.mxu0 0.0
    %162 = vmatprep.subr.mxu0 0.0
    %163 = vmatpush1.msra.mxu0 0.0
    %164 = vmatprep.subr.mxu0 0.0
    %165 = vmatpush1.msra.mxu0 0.0
    %166 = vmatprep.subr.mxu0 0.0
    %167 = vmatpush1.msra.mxu0 0.0
    %168 = vmatprep.subr.mxu0 0.0
    %169 = vmatpush1.msra.mxu0 0.0
    %170 = vmatprep.subr.mxu0 0.0
    %171 = vmatpush1.msra.mxu0 0.0
    %172 = vmatprep.mubr.f32.mxu0 0.0
    %173 = vmatmul.mubr.f32.gmra.mrb[0].mxu0 %v85
    %v174 = vpop.f32.mrb[0].mxu0
    %v175 = vadd.f32 %v76, %v174
    %v176 = vpop.f32.mrb[0].mxu0
    %v177 = vadd.f32 %v80, %v176
    %178 = vmatprep.mubr.f32.mxu0 0.0
    %179 = vmatmul.mubr.f32.gmra.mrb[0].mxu0 %v88
    %v180 = vpop.f32.mrb[0].mxu0
    %v181 = vadd.f32 %v76, %v180
    %v182 = vpop.f32.mrb[0].mxu0
    %v183 = vadd.f32 %v80, %v182
    %184 = vmatprep.mubr.f32.mxu0 0.0
    %185 = vmatmul.mubr.f32.gmra.mrb[0].mxu0 %v91
    %v186 = vpop.f32.mrb[0].mxu0
    %v187 = vadd.f32 %v76, %v186
    %v188 = vpop.f32.mrb[0].mxu0
    %v189 = vadd.f32 %v80, %v188
    %190 = vmatprep.mubr.f32.mxu0 0.0
    %191 = vmatmul.mubr.f32.gmra.mrb[0].mxu0 %v94
    %v192 = vpop.f32.mrb[0].mxu0
    %v193 = vadd.f32 %v76, %v192
    %v194 = vpop.f32.mrb[0].mxu0
    %v195 = vadd.f32 %v80, %v194
    %196 = vmatprep.mubr.f32.mxu0 0.0
    %197 = vmatmul.mubr.f32.gmra.mrb[0].mxu0 %v97
    %v198 = vpop.f32.mrb[0].mxu0
    %v199 = vadd.f32 %v76, %v198
    %v200 = vpop.f32.mrb[0].mxu0
    %v201 = vadd.f32 %v80, %v200
    %202 = vmatprep.mubr.f32.mxu0 0.0
    %203 = vmatmul.mubr.f32.gmra.mrb[0].mxu0 %v100
    %v204 = vpop.f32.mrb[0].mxu0
    %v205 = vadd.f32 %v76, %v204
    %v206 = vpop.f32.mrb[0].mxu0
    %v207 = vadd.f32 %v80, %v206
    %208 = vmatprep.mubr.f32.mxu0 0.0
    %209 = vmatmul.mubr.f32.gmra.mrb[0].mxu0 %v103
    %v210 = vpop.f32.mrb[0].mxu0
    %v211 = vadd.f32 %v76, %v210
    %v212 = vpop.f32.mrb[0].mxu0
    %v213 = vadd.f32 %v80, %v212
    %214 = vmatprep.mubr.f32.mxu0 0.0
    %215 = vmatmul.mubr.f32.gmra.mrb[0].mxu0 %v106
    %v216 = vpop.f32.mrb[0].mxu0
    %v217 = vadd.f32 %v76, %v216
    %v218 = vpop.f32.mrb[0].mxu0
    %v219 = vadd.f32 %v80, %v218
    %220 = vdwg.mxu0
    %v221 = vtanh.pop %v175
    %v222 = vtanh.pop %v177
    %v223 = vmul.f32 %v221, 0.5
    %v224 = vmul.f32 %v222, 0.5
    %v225 = vadd.f32 %v223, 0.5
    %v226 = vadd.f32 %v224, 0.5
    %v227 = vmul.f32 %v225, 0.0
    %229 = vrot.lane.b32.xlu0 %v222, 64
    %v230 = vpop.permute.xlu0 %229
    %v232 = vmul.f32 %v225, %v230
    %234 = vrot.lane.b32.xlu0 %v232, 64
    %v235 = vpop.permute.xlu0 %234
    %v237 = vadd.f32 %v227, %v235
    %v238 = vtanh.pop %v237
    %240 = vrot.lane.b32.xlu0 %v238, 64
    %v241 = vpop.permute.xlu0 %240
    %v243 = vmul.f32 %v226, %v241
    %v244 = vlaneseq
    %v245 = vand.u32 %v244, 127
    %vm246 = vcmp.lt.s32.totalorder %v245, 32
    %v247 = vsel %vm246, %v243, 0.0
    %249 = vrot.lane.b32.xlu0 %v237, 64
    %v250 = vpop.permute.xlu0 %249
    %v252 = vsel %vm246, %v250, 0.0
    %vm253 = vcmask 523264
    %v255 = vsel %vm253, %v247, 0
    %257 = vmatprep.subr.mxu0 %v46
    %258 = vmatpush1.msra.mxu0 %v45
    %259 = vmatprep.subr.mxu0 %v48
    %260 = vmatpush1.msra.mxu0 %v47
    %261 = vmatprep.subr.mxu0 %v50
    %262 = vmatpush1.msra.mxu0 %v49
    %263 = vmatprep.subr.mxu0 %v52
    %264 = vmatpush1.msra.mxu0 %v51
    %265 = vmatprep.subr.mxu0 %v54
    %266 = vmatpush1.msra.mxu0 %v53
    %267 = vmatprep.subr.mxu0 %v56
    %268 = vmatpush1.msra.mxu0 %v55
    %269 = vmatprep.subr.mxu0 %v58
    %270 = vmatpush1.msra.mxu0 %v57
    %271 = vmatprep.subr.mxu0 %v60
    %272 = vmatpush1.msra.mxu0 %v59
    %273 = vmatprep.subr.mxu0 0.0
    %274 = vmatpush1.msra.mxu0 0.0
    %275 = vmatprep.subr.mxu0 0.0
    %276 = vmatpush1.msra.mxu0 0.0
    %277 = vmatprep.subr.mxu0 0.0
    %278 = vmatpush1.msra.mxu0 0.0
    %279 = vmatprep.subr.mxu0 0.0
    %280 = vmatpush1.msra.mxu0 0.0
    %281 = vmatprep.subr.mxu0 0.0
    %282 = vmatpush1.msra.mxu0 0.0
    %283 = vmatprep.subr.mxu0 0.0
    %284 = vmatpush1.msra.mxu0 0.0
    %285 = vmatprep.subr.mxu0 0.0
    %286 = vmatpush1.msra.mxu0 0.0
    %287 = vmatprep.subr.mxu0 0.0
    %288 = vmatpush1.msra.mxu0 0.0
    %289 = vmatprep.subr.mxu0 0.0
    %290 = vmatpush1.msra.mxu0 0.0
    %291 = vmatprep.subr.mxu0 0.0
    %292 = vmatpush1.msra.mxu0 0.0
    %293 = vmatprep.subr.mxu0 0.0
    %294 = vmatpush1.msra.mxu0 0.0
    %295 = vmatprep.subr.mxu0 0.0
    %296 = vmatpush1.msra.mxu0 0.0
    %297 = vmatprep.subr.mxu0 0.0
    %298 = vmatpush1.msra.mxu0 0.0
    %299 = vmatprep.subr.mxu0 0.0
    %300 = vmatpush1.msra.mxu0 0.0
    %301 = vmatprep.subr.mxu0 0.0
    %302 = vmatpush1.msra.mxu0 0.0
    %303 = vmatprep.subr.mxu0 0.0
    %304 = vmatpush1.msra.mxu0 0.0
    %305 = vmatprep.subr.mxu0 0.0
    %306 = vmatpush1.msra.mxu0 0.0
    %307 = vmatprep.subr.mxu0 0.0
    %308 = vmatpush1.msra.mxu0 0.0
    %309 = vmatprep.subr.mxu0 0.0
    %310 = vmatpush1.msra.mxu0 0.0
    %311 = vmatprep.subr.mxu0 0.0
    %312 = vmatpush1.msra.mxu0 0.0
    %313 = vmatprep.subr.mxu0 0.0
    %314 = vmatpush1.msra.mxu0 0.0
    %315 = vmatprep.subr.mxu0 0.0
    %316 = vmatpush1.msra.mxu0 0.0
    %317 = vmatprep.subr.mxu0 0.0
    %318 = vmatpush1.msra.mxu0 0.0
    %319 = vmatprep.subr.mxu0 0.0
    %320 = vmatpush1.msra.mxu0 0.0
    %321 = vmatprep.mubr.f32.mxu0 0.0
    %322 = vmatmul.mubr.f32.gmra.mrb[0].mxu0 %v255
    %v323 = vpop.f32.mrb[0].mxu0
    %v324 = vadd.f32 %v181, %v323
    %v325 = vpop.f32.mrb[0].mxu0
    %v326 = vadd.f32 %v183, %v325
    %327 = vdwg.mxu0
    %v328 = vtanh.pop %v324
    %v329 = vtanh.pop %v326
    %v330 = vmul.f32 %v328, 0.5
    %v331 = vmul.f32 %v329, 0.5
    %v332 = vadd.f32 %v330, 0.5
    %v333 = vadd.f32 %v331, 0.5
    %335 = vrot.lane.b32.xlu0 %v252, 64
    %v336 = vpop.permute.xlu0 %335
    %v338 = vmul.f32 %v332, %v336
    %340 = vrot.lane.b32.xlu0 %v329, 64
    %v341 = vpop.permute.xlu0 %340
    %v343 = vmul.f32 %v332, %v341
    %345 = vrot.lane.b32.xlu0 %v343, 64
    %v346 = vpop.permute.xlu0 %345
    %v348 = vadd.f32 %v338, %v346
    %v349 = vtanh.pop %v348
    %351 = vrot.lane.b32.xlu0 %v349, 64
    %v352 = vpop.permute.xlu0 %351
    %v354 = vmul.f32 %v333, %v352
    %v356 = vsel %vm253, %v354, 0
    %358 = vmatprep.subr.mxu0 %v46
    %359 = vmatpush1.msra.mxu0 %v45
    %360 = vmatprep.subr.mxu0 %v48
    %361 = vmatpush1.msra.mxu0 %v47
    %362 = vmatprep.subr.mxu0 %v50
    %363 = vmatpush1.msra.mxu0 %v49
    %364 = vmatprep.subr.mxu0 %v52
    %365 = vmatpush1.msra.mxu0 %v51
    %366 = vmatprep.subr.mxu0 %v54
    %367 = vmatpush1.msra.mxu0 %v53
    %368 = vmatprep.subr.mxu0 %v56
    %369 = vmatpush1.msra.mxu0 %v55
    %370 = vmatprep.subr.mxu0 %v58
    %371 = vmatpush1.msra.mxu0 %v57
    %372 = vmatprep.subr.mxu0 %v60
    %373 = vmatpush1.msra.mxu0 %v59
    %374 = vmatprep.subr.mxu0 0.0
    %375 = vmatpush1.msra.mxu0 0.0
    %376 = vmatprep.subr.mxu0 0.0
    %377 = vmatpush1.msra.mxu0 0.0
    %378 = vmatprep.subr.mxu0 0.0
    %379 = vmatpush1.msra.mxu0 0.0
    %380 = vmatprep.subr.mxu0 0.0
    %381 = vmatpush1.msra.mxu0 0.0
    %382 = vmatprep.subr.mxu0 0.0
    %383 = vmatpush1.msra.mxu0 0.0
    %384 = vmatprep.subr.mxu0 0.0
    %385 = vmatpush1.msra.mxu0 0.0
    %386 = vmatprep.subr.mxu0 0.0
    %387 = vmatpush1.msra.mxu0 0.0
    %388 = vmatprep.subr.mxu0 0.0
    %389 = vmatpush1.msra.mxu0 0.0
    %390 = vmatprep.subr.mxu0 0.0
    %391 = vmatpush1.msra.mxu0 0.0
    %392 = vmatprep.subr.mxu0 0.0
    %393 = vmatpush1.msra.mxu0 0.0
    %394 = vmatprep.subr.mxu0 0.0
    %395 = vmatpush1.msra.mxu0 0.0
    %396 = vmatprep.subr.mxu0 0.0
    %397 = vmatpush1.msra.mxu0 0.0
    %398 = vmatprep.subr.mxu0 0.0
    %399 = vmatpush1.msra.mxu0 0.0
    %400 = vmatprep.subr.mxu0 0.0
    %401 = vmatpush1.msra.mxu0 0.0
    %402 = vmatprep.subr.mxu0 0.0
    %403 = vmatpush1.msra.mxu0 0.0
    %404 = vmatprep.subr.mxu0 0.0
    %405 = vmatpush1.msra.mxu0 0.0
    %406 = vmatprep.subr.mxu0 0.0
    %407 = vmatpush1.msra.mxu0 0.0
    %408 = vmatprep.subr.mxu0 0.0
    %409 = vmatpush1.msra.mxu0 0.0
    %410 = vmatprep.subr.mxu0 0.0
    %411 = vmatpush1.msra.mxu0 0.0
    %412 = vmatprep.subr.mxu0 0.0
    %413 = vmatpush1.msra.mxu0 0.0
    %414 = vmatprep.subr.mxu0 0.0
    %415 = vmatpush1.msra.mxu0 0.0
    %416 = vmatprep.subr.mxu0 0.0
    %417 = vmatpush1.msra.mxu0 0.0
    %418 = vmatprep.subr.mxu0 0.0
    %419 = vmatpush1.msra.mxu0 0.0
    %420 = vmatprep.subr.mxu0 0.0
    %421 = vmatpush1.msra.mxu0 0.0
    %422 = vmatprep.mubr.f32.mxu0 0.0
    %423 = vmatmul.mubr.f32.gmra.mrb[0].mxu0 %v356
    %v424 = vpop.f32.mrb[0].mxu0
    %v425 = vadd.f32 %v187, %v424
    %v426 = vpop.f32.mrb[0].mxu0
    %v427 = vadd.f32 %v189, %v426
    %428 = vdwg.mxu0
    %v429 = vtanh.pop %v425
    %v430 = vtanh.pop %v427
    %v431 = vmul.f32 %v429, 0.5
    %v432 = vmul.f32 %v430, 0.5
    %v433 = vadd.f32 %v431, 0.5
    %v434 = vadd.f32 %v432, 0.5
    %v435 = vmul.f32 %v433, %v348
    %437 = vrot.lane.b32.xlu0 %v430, 64
    %v438 = vpop.permute.xlu0 %437
    %v440 = vmul.f32 %v433, %v438
    %442 = vrot.lane.b32.xlu0 %v440, 64
    %v443 = vpop.permute.xlu0 %442
    %v445 = vadd.f32 %v435, %v443
    %v446 = vtanh.pop %v445
    %448 = vrot.lane.b32.xlu0 %v446, 64
    %v449 = vpop.permute.xlu0 %448
    %v451 = vmul.f32 %v434, %v449
    %v453 = vsel %vm253, %v451, 0
    %455 = vmatprep.subr.mxu0 %v46
    %456 = vmatpush1.msra.mxu0 %v45
    %457 = vmatprep.subr.mxu0 %v48
    %458 = vmatpush1.msra.mxu0 %v47
    %459 = vmatprep.subr.mxu0 %v50
    %460 = vmatpush1.msra.mxu0 %v49
    %461 = vmatprep.subr.mxu0 %v52
    %462 = vmatpush1.msra.mxu0 %v51
    %463 = vmatprep.subr.mxu0 %v54
    %464 = vmatpush1.msra.mxu0 %v53
    %465 = vmatprep.subr.mxu0 %v56
    %466 = vmatpush1.msra.mxu0 %v55
    %467 = vmatprep.subr.mxu0 %v58
    %468 = vmatpush1.msra.mxu0 %v57
    %469 = vmatprep.subr.mxu0 %v60
    %470 = vmatpush1.msra.mxu0 %v59
    %471 = vmatprep.subr.mxu0 0.0
    %472 = vmatpush1.msra.mxu0 0.0
    %473 = vmatprep.subr.mxu0 0.0
    %474 = vmatpush1.msra.mxu0 0.0
    %475 = vmatprep.subr.mxu0 0.0
    %476 = vmatpush1.msra.mxu0 0.0
    %477 = vmatprep.subr.mxu0 0.0
    %478 = vmatpush1.msra.mxu0 0.0
    %479 = vmatprep.subr.mxu0 0.0
    %480 = vmatpush1.msra.mxu0 0.0
    %481 = vmatprep.subr.mxu0 0.0
    %482 = vmatpush1.msra.mxu0 0.0
    %483 = vmatprep.subr.mxu0 0.0
    %484 = vmatpush1.msra.mxu0 0.0
    %485 = vmatprep.subr.mxu0 0.0
    %486 = vmatpush1.msra.mxu0 0.0
    %487 = vmatprep.subr.mxu0 0.0
    %488 = vmatpush1.msra.mxu0 0.0
    %489 = vmatprep.subr.mxu0 0.0
    %490 = vmatpush1.msra.mxu0 0.0
    %491 = vmatprep.subr.mxu0 0.0
    %492 = vmatpush1.msra.mxu0 0.0
    %493 = vmatprep.subr.mxu0 0.0
    %494 = vmatpush1.msra.mxu0 0.0
    %495 = vmatprep.subr.mxu0 0.0
    %496 = vmatpush1.msra.mxu0 0.0
    %497 = vmatprep.subr.mxu0 0.0
    %498 = vmatpush1.msra.mxu0 0.0
    %499 = vmatprep.subr.mxu0 0.0
    %500 = vmatpush1.msra.mxu0 0.0
    %501 = vmatprep.subr.mxu0 0.0
    %502 = vmatpush1.msra.mxu0 0.0
    %503 = vmatprep.subr.mxu0 0.0
    %504 = vmatpush1.msra.mxu0 0.0
    %505 = vmatprep.subr.mxu0 0.0
    %506 = vmatpush1.msra.mxu0 0.0
    %507 = vmatprep.subr.mxu0 0.0
    %508 = vmatpush1.msra.mxu0 0.0
    %509 = vmatprep.subr.mxu0 0.0
    %510 = vmatpush1.msra.mxu0 0.0
    %511 = vmatprep.subr.mxu0 0.0
    %512 = vmatpush1.msra.mxu0 0.0
    %513 = vmatprep.subr.mxu0 0.0
    %514 = vmatpush1.msra.mxu0 0.0
    %515 = vmatprep.subr.mxu0 0.0
    %516 = vmatpush1.msra.mxu0 0.0
    %517 = vmatprep.subr.mxu0 0.0
    %518 = vmatpush1.msra.mxu0 0.0
    %519 = vmatprep.mubr.f32.mxu0 0.0
    %520 = vmatmul.mubr.f32.gmra.mrb[0].mxu0 %v453
    %v521 = vpop.f32.mrb[0].mxu0
    %v522 = vadd.f32 %v193, %v521
    %v523 = vpop.f32.mrb[0].mxu0
    %v524 = vadd.f32 %v195, %v523
    %525 = vdwg.mxu0
    %v526 = vtanh.pop %v522
    %v527 = vtanh.pop %v524
    %v528 = vmul.f32 %v526, 0.5
    %v529 = vmul.f32 %v527, 0.5
    %v530 = vadd.f32 %v528, 0.5
    %v531 = vadd.f32 %v529, 0.5
    %v532 = vmul.f32 %v530, %v445
    %534 = vrot.lane.b32.xlu0 %v527, 64
    %v535 = vpop.permute.xlu0 %534
    %v537 = vmul.f32 %v530, %v535
    %539 = vrot.lane.b32.xlu0 %v537, 64
    %v540 = vpop.permute.xlu0 %539
    %v542 = vadd.f32 %v532, %v540
    %v543 = vtanh.pop %v542
    %545 = vrot.lane.b32.xlu0 %v543, 64
    %v546 = vpop.permute.xlu0 %545
    %v548 = vmul.f32 %v531, %v546
    %v550 = vsel %vm253, %v548, 0
    %552 = vmatprep.subr.mxu0 %v46
    %553 = vmatpush1.msra.mxu0 %v45
    %554 = vmatprep.subr.mxu0 %v48
    %555 = vmatpush1.msra.mxu0 %v47
    %556 = vmatprep.subr.mxu0 %v50
    %557 = vmatpush1.msra.mxu0 %v49
    %558 = vmatprep.subr.mxu0 %v52
    %559 = vmatpush1.msra.mxu0 %v51
    %560 = vmatprep.subr.mxu0 %v54
    %561 = vmatpush1.msra.mxu0 %v53
    %562 = vmatprep.subr.mxu0 %v56
    %563 = vmatpush1.msra.mxu0 %v55
    %564 = vmatprep.subr.mxu0 %v58
    %565 = vmatpush1.msra.mxu0 %v57
    %566 = vmatprep.subr.mxu0 %v60
    %567 = vmatpush1.msra.mxu0 %v59
    %568 = vmatprep.subr.mxu0 0.0
    %569 = vmatpush1.msra.mxu0 0.0
    %570 = vmatprep.subr.mxu0 0.0
    %571 = vmatpush1.msra.mxu0 0.0
    %572 = vmatprep.subr.mxu0 0.0
    %573 = vmatpush1.msra.mxu0 0.0
    %574 = vmatprep.subr.mxu0 0.0
    %575 = vmatpush1.msra.mxu0 0.0
    %576 = vmatprep.subr.mxu0 0.0
    %577 = vmatpush1.msra.mxu0 0.0
    %578 = vmatprep.subr.mxu0 0.0
    %579 = vmatpush1.msra.mxu0 0.0
    %580 = vmatprep.subr.mxu0 0.0
    %581 = vmatpush1.msra.mxu0 0.0
    %582 = vmatprep.subr.mxu0 0.0
    %583 = vmatpush1.msra.mxu0 0.0
    %584 = vmatprep.subr.mxu0 0.0
    %585 = vmatpush1.msra.mxu0 0.0
    %586 = vmatprep.subr.mxu0 0.0
    %587 = vmatpush1.msra.mxu0 0.0
    %588 = vmatprep.subr.mxu0 0.0
    %589 = vmatpush1.msra.mxu0 0.0
    %590 = vmatprep.subr.mxu0 0.0
    %591 = vmatpush1.msra.mxu0 0.0
    %592 = vmatprep.subr.mxu0 0.0
    %593 = vmatpush1.msra.mxu0 0.0
    %594 = vmatprep.subr.mxu0 0.0
    %595 = vmatpush1.msra.mxu0 0.0
    %596 = vmatprep.subr.mxu0 0.0
    %597 = vmatpush1.msra.mxu0 0.0
    %598 = vmatprep.subr.mxu0 0.0
    %599 = vmatpush1.msra.mxu0 0.0
    %600 = vmatprep.subr.mxu0 0.0
    %601 = vmatpush1.msra.mxu0 0.0
    %602 = vmatprep.subr.mxu0 0.0
    %603 = vmatpush1.msra.mxu0 0.0
    %604 = vmatprep.subr.mxu0 0.0
    %605 = vmatpush1.msra.mxu0 0.0
    %606 = vmatprep.subr.mxu0 0.0
    %607 = vmatpush1.msra.mxu0 0.0
    %608 = vmatprep.subr.mxu0 0.0
    %609 = vmatpush1.msra.mxu0 0.0
    %610 = vmatprep.subr.mxu0 0.0
    %611 = vmatpush1.msra.mxu0 0.0
    %612 = vmatprep.subr.mxu0 0.0
    %613 = vmatpush1.msra.mxu0 0.0
    %614 = vmatprep.subr.mxu0 0.0
    %615 = vmatpush1.msra.mxu0 0.0
    %616 = vmatprep.mubr.f32.mxu0 0.0
    %617 = vmatmul.mubr.f32.gmra.mrb[0].mxu0 %v550
    %v618 = vpop.f32.mrb[0].mxu0
    %v619 = vadd.f32 %v199, %v618
    %v620 = vpop.f32.mrb[0].mxu0
    %v621 = vadd.f32 %v201, %v620
    %622 = vdwg.mxu0
    %v623 = vtanh.pop %v619
    %v624 = vtanh.pop %v621
    %v625 = vmul.f32 %v623, 0.5
    %v626 = vmul.f32 %v624, 0.5
    %v627 = vadd.f32 %v625, 0.5
    %v628 = vadd.f32 %v626, 0.5
    %v629 = vmul.f32 %v627, %v542
    %631 = vrot.lane.b32.xlu0 %v624, 64
    %v632 = vpop.permute.xlu0 %631
    %v634 = vmul.f32 %v627, %v632
    %636 = vrot.lane.b32.xlu0 %v634, 64
    %v637 = vpop.permute.xlu0 %636
    %v639 = vadd.f32 %v629, %v637
    %v640 = vtanh.pop %v639
    %642 = vrot.lane.b32.xlu0 %v640, 64
    %v643 = vpop.permute.xlu0 %642
    %v645 = vmul.f32 %v628, %v643
    %v647 = vsel %vm253, %v645, 0
    %649 = vmatprep.subr.mxu0 %v46
    %650 = vmatpush1.msra.mxu0 %v45
    %651 = vmatprep.subr.mxu0 %v48
    %652 = vmatpush1.msra.mxu0 %v47
    %653 = vmatprep.subr.mxu0 %v50
    %654 = vmatpush1.msra.mxu0 %v49
    %655 = vmatprep.subr.mxu0 %v52
    %656 = vmatpush1.msra.mxu0 %v51
    %657 = vmatprep.subr.mxu0 %v54
    %658 = vmatpush1.msra.mxu0 %v53
    %659 = vmatprep.subr.mxu0 %v56
    %660 = vmatpush1.msra.mxu0 %v55
    %661 = vmatprep.subr.mxu0 %v58
    %662 = vmatpush1.msra.mxu0 %v57
    %663 = vmatprep.subr.mxu0 %v60
    %664 = vmatpush1.msra.mxu0 %v59
    %665 = vmatprep.subr.mxu0 0.0
    %666 = vmatpush1.msra.mxu0 0.0
    %667 = vmatprep.subr.mxu0 0.0
    %668 = vmatpush1.msra.mxu0 0.0
    %669 = vmatprep.subr.mxu0 0.0
    %670 = vmatpush1.msra.mxu0 0.0
    %671 = vmatprep.subr.mxu0 0.0
    %672 = vmatpush1.msra.mxu0 0.0
    %673 = vmatprep.subr.mxu0 0.0
    %674 = vmatpush1.msra.mxu0 0.0
    %675 = vmatprep.subr.mxu0 0.0
    %676 = vmatpush1.msra.mxu0 0.0
    %677 = vmatprep.subr.mxu0 0.0
    %678 = vmatpush1.msra.mxu0 0.0
    %679 = vmatprep.subr.mxu0 0.0
    %680 = vmatpush1.msra.mxu0 0.0
    %681 = vmatprep.subr.mxu0 0.0
    %682 = vmatpush1.msra.mxu0 0.0
    %683 = vmatprep.subr.mxu0 0.0
    %684 = vmatpush1.msra.mxu0 0.0
    %685 = vmatprep.subr.mxu0 0.0
    %686 = vmatpush1.msra.mxu0 0.0
    %687 = vmatprep.subr.mxu0 0.0
    %688 = vmatpush1.msra.mxu0 0.0
    %689 = vmatprep.subr.mxu0 0.0
    %690 = vmatpush1.msra.mxu0 0.0
    %691 = vmatprep.subr.mxu0 0.0
    %692 = vmatpush1.msra.mxu0 0.0
    %693 = vmatprep.subr.mxu0 0.0
    %694 = vmatpush1.msra.mxu0 0.0
    %695 = vmatprep.subr.mxu0 0.0
    %696 = vmatpush1.msra.mxu0 0.0
    %697 = vmatprep.subr.mxu0 0.0
    %698 = vmatpush1.msra.mxu0 0.0
    %699 = vmatprep.subr.mxu0 0.0
    %700 = vmatpush1.msra.mxu0 0.0
    %701 = vmatprep.subr.mxu0 0.0
    %702 = vmatpush1.msra.mxu0 0.0
    %703 = vmatprep.subr.mxu0 0.0
    %704 = vmatpush1.msra.mxu0 0.0
    %705 = vmatprep.subr.mxu0 0.0
    %706 = vmatpush1.msra.mxu0 0.0
    %707 = vmatprep.subr.mxu0 0.0
    %708 = vmatpush1.msra.mxu0 0.0
    %709 = vmatprep.subr.mxu0 0.0
    %710 = vmatpush1.msra.mxu0 0.0
    %711 = vmatprep.subr.mxu0 0.0
    %712 = vmatpush1.msra.mxu0 0.0
    %713 = vmatprep.mubr.f32.mxu0 0.0
    %714 = vmatmul.mubr.f32.gmra.mrb[0].mxu0 %v647
    %v715 = vpop.f32.mrb[0].mxu0
    %v716 = vadd.f32 %v205, %v715
    %v717 = vpop.f32.mrb[0].mxu0
    %v718 = vadd.f32 %v207, %v717
    %719 = vdwg.mxu0
    %v720 = vtanh.pop %v716
    %v721 = vtanh.pop %v718
    %v722 = vmul.f32 %v720, 0.5
    %v723 = vmul.f32 %v721, 0.5
    %v724 = vadd.f32 %v722, 0.5
    %v725 = vadd.f32 %v723, 0.5
    %v726 = vmul.f32 %v724, %v639
    %728 = vrot.lane.b32.xlu0 %v721, 64
    %v729 = vpop.permute.xlu0 %728
    %v731 = vmul.f32 %v724, %v729
    %733 = vrot.lane.b32.xlu0 %v731, 64
    %v734 = vpop.permute.xlu0 %733
    %v736 = vadd.f32 %v726, %v734
    %v737 = vtanh.pop %v736
    %739 = vrot.lane.b32.xlu0 %v737, 64
    %v740 = vpop.permute.xlu0 %739
    %v742 = vmul.f32 %v725, %v740
    %v744 = vsel %vm253, %v742, 0
    %746 = vmatprep.subr.mxu0 %v46
    %747 = vmatpush1.msra.mxu0 %v45
    %748 = vmatprep.subr.mxu0 %v48
    %749 = vmatpush1.msra.mxu0 %v47
    %750 = vmatprep.subr.mxu0 %v50
    %751 = vmatpush1.msra.mxu0 %v49
    %752 = vmatprep.subr.mxu0 %v52
    %753 = vmatpush1.msra.mxu0 %v51
    %754 = vmatprep.subr.mxu0 %v54
    %755 = vmatpush1.msra.mxu0 %v53
    %756 = vmatprep.subr.mxu0 %v56
    %757 = vmatpush1.msra.mxu0 %v55
    %758 = vmatprep.subr.mxu0 %v58
    %759 = vmatpush1.msra.mxu0 %v57
    %760 = vmatprep.subr.mxu0 %v60
    %761 = vmatpush1.msra.mxu0 %v59
    %762 = vmatprep.subr.mxu0 0.0
    %763 = vmatpush1.msra.mxu0 0.0
    %764 = vmatprep.subr.mxu0 0.0
    %765 = vmatpush1.msra.mxu0 0.0
    %766 = vmatprep.subr.mxu0 0.0
    %767 = vmatpush1.msra.mxu0 0.0
    %768 = vmatprep.subr.mxu0 0.0
    %769 = vmatpush1.msra.mxu0 0.0
    %770 = vmatprep.subr.mxu0 0.0
    %771 = vmatpush1.msra.mxu0 0.0
    %772 = vmatprep.subr.mxu0 0.0
    %773 = vmatpush1.msra.mxu0 0.0
    %774 = vmatprep.subr.mxu0 0.0
    %775 = vmatpush1.msra.mxu0 0.0
    %776 = vmatprep.subr.mxu0 0.0
    %777 = vmatpush1.msra.mxu0 0.0
    %778 = vmatprep.subr.mxu0 0.0
    %779 = vmatpush1.msra.mxu0 0.0
    %780 = vmatprep.subr.mxu0 0.0
    %781 = vmatpush1.msra.mxu0 0.0
    %782 = vmatprep.subr.mxu0 0.0
    %783 = vmatpush1.msra.mxu0 0.0
    %784 = vmatprep.subr.mxu0 0.0
    %785 = vmatpush1.msra.mxu0 0.0
    %786 = vmatprep.subr.mxu0 0.0
    %787 = vmatpush1.msra.mxu0 0.0
    %788 = vmatprep.subr.mxu0 0.0
    %789 = vmatpush1.msra.mxu0 0.0
    %790 = vmatprep.subr.mxu0 0.0
    %791 = vmatpush1.msra.mxu0 0.0
    %792 = vmatprep.subr.mxu0 0.0
    %793 = vmatpush1.msra.mxu0 0.0
    %794 = vmatprep.subr.mxu0 0.0
    %795 = vmatpush1.msra.mxu0 0.0
    %796 = vmatprep.subr.mxu0 0.0
    %797 = vmatpush1.msra.mxu0 0.0
    %798 = vmatprep.subr.mxu0 0.0
    %799 = vmatpush1.msra.mxu0 0.0
    %800 = vmatprep.subr.mxu0 0.0
    %801 = vmatpush1.msra.mxu0 0.0
    %802 = vmatprep.subr.mxu0 0.0
    %803 = vmatpush1.msra.mxu0 0.0
    %804 = vmatprep.subr.mxu0 0.0
    %805 = vmatpush1.msra.mxu0 0.0
    %806 = vmatprep.subr.mxu0 0.0
    %807 = vmatpush1.msra.mxu0 0.0
    %808 = vmatprep.subr.mxu0 0.0
    %809 = vmatpush1.msra.mxu0 0.0
    %810 = vmatprep.mubr.f32.mxu0 0.0
    %811 = vmatmul.mubr.f32.gmra.mrb[0].mxu0 %v744
    %v812 = vpop.f32.mrb[0].mxu0
    %v813 = vadd.f32 %v211, %v812
    %v814 = vpop.f32.mrb[0].mxu0
    %v815 = vadd.f32 %v213, %v814
    %816 = vdwg.mxu0
    %v817 = vtanh.pop %v813
    %v818 = vtanh.pop %v815
    %v819 = vmul.f32 %v817, 0.5
    %v820 = vmul.f32 %v818, 0.5
    %v821 = vadd.f32 %v819, 0.5
    %v822 = vadd.f32 %v820, 0.5
    %v823 = vmul.f32 %v821, %v736
    %825 = vrot.lane.b32.xlu0 %v818, 64
    %v826 = vpop.permute.xlu0 %825
    %v828 = vmul.f32 %v821, %v826
    %830 = vrot.lane.b32.xlu0 %v828, 64
    %v831 = vpop.permute.xlu0 %830
    %v833 = vadd.f32 %v823, %v831
    %v834 = vtanh.pop %v833
    %836 = vrot.lane.b32.xlu0 %v834, 64
    %v837 = vpop.permute.xlu0 %836
    %v839 = vmul.f32 %v822, %v837
    %v841 = vsel %vm253, %v839, 0
    %843 = vmatprep.subr.mxu0 %v46
    %844 = vmatpush1.msra.mxu0 %v45
    %845 = vmatprep.subr.mxu0 %v48
    %846 = vmatpush1.msra.mxu0 %v47
    %847 = vmatprep.subr.mxu0 %v50
    %848 = vmatpush1.msra.mxu0 %v49
    %849 = vmatprep.subr.mxu0 %v52
    %850 = vmatpush1.msra.mxu0 %v51
    %851 = vmatprep.subr.mxu0 %v54
    %852 = vmatpush1.msra.mxu0 %v53
    %853 = vmatprep.subr.mxu0 %v56
    %854 = vmatpush1.msra.mxu0 %v55
    %855 = vmatprep.subr.mxu0 %v58
    %856 = vmatpush1.msra.mxu0 %v57
    %857 = vmatprep.subr.mxu0 %v60
    %858 = vmatpush1.msra.mxu0 %v59
    %859 = vmatprep.subr.mxu0 0.0
    %860 = vmatpush1.msra.mxu0 0.0
    %861 = vmatprep.subr.mxu0 0.0
    %862 = vmatpush1.msra.mxu0 0.0
    %863 = vmatprep.subr.mxu0 0.0
    %864 = vmatpush1.msra.mxu0 0.0
    %865 = vmatprep.subr.mxu0 0.0
    %866 = vmatpush1.msra.mxu0 0.0
    %867 = vmatprep.subr.mxu0 0.0
    %868 = vmatpush1.msra.mxu0 0.0
    %869 = vmatprep.subr.mxu0 0.0
    %870 = vmatpush1.msra.mxu0 0.0
    %871 = vmatprep.subr.mxu0 0.0
    %872 = vmatpush1.msra.mxu0 0.0
    %873 = vmatprep.subr.mxu0 0.0
    %874 = vmatpush1.msra.mxu0 0.0
    %875 = vmatprep.subr.mxu0 0.0
    %876 = vmatpush1.msra.mxu0 0.0
    %877 = vmatprep.subr.mxu0 0.0
    %878 = vmatpush1.msra.mxu0 0.0
    %879 = vmatprep.subr.mxu0 0.0
    %880 = vmatpush1.msra.mxu0 0.0
    %881 = vmatprep.subr.mxu0 0.0
    %882 = vmatpush1.msra.mxu0 0.0
    %883 = vmatprep.subr.mxu0 0.0
    %884 = vmatpush1.msra.mxu0 0.0
    %885 = vmatprep.subr.mxu0 0.0
    %886 = vmatpush1.msra.mxu0 0.0
    %887 = vmatprep.subr.mxu0 0.0
    %888 = vmatpush1.msra.mxu0 0.0
    %889 = vmatprep.subr.mxu0 0.0
    %890 = vmatpush1.msra.mxu0 0.0
    %891 = vmatprep.subr.mxu0 0.0
    %892 = vmatpush1.msra.mxu0 0.0
    %893 = vmatprep.subr.mxu0 0.0
    %894 = vmatpush1.msra.mxu0 0.0
    %895 = vmatprep.subr.mxu0 0.0
    %896 = vmatpush1.msra.mxu0 0.0
    %897 = vmatprep.subr.mxu0 0.0
    %898 = vmatpush1.msra.mxu0 0.0
    %899 = vmatprep.subr.mxu0 0.0
    %900 = vmatpush1.msra.mxu0 0.0
    %901 = vmatprep.subr.mxu0 0.0
    %902 = vmatpush1.msra.mxu0 0.0
    %903 = vmatprep.subr.mxu0 0.0
    %904 = vmatpush1.msra.mxu0 0.0
    %905 = vmatprep.subr.mxu0 0.0
    %906 = vmatpush1.msra.mxu0 0.0
    %907 = vmatprep.mubr.f32.mxu0 0.0
    %908 = vmatmul.mubr.f32.gmra.mrb[0].mxu0 %v841
    %v909 = vpop.f32.mrb[0].mxu0
    %v910 = vadd.f32 %v217, %v909
    %v911 = vpop.f32.mrb[0].mxu0
    %v912 = vadd.f32 %v219, %v911
    %913 = vdwg.mxu0
    %v914 = vtanh.pop %v910
    %v915 = vtanh.pop %v912
    %v916 = vmul.f32 %v914, 0.5
    %v917 = vmul.f32 %v915, 0.5
    %v918 = vadd.f32 %v916, 0.5
    %v919 = vadd.f32 %v917, 0.5
    %v920 = vmul.f32 %v918, %v833
    %922 = vrot.lane.b32.xlu0 %v915, 64
    %v923 = vpop.permute.xlu0 %922
    %v925 = vmul.f32 %v918, %v923
    %927 = vrot.lane.b32.xlu0 %v925, 64
    %v928 = vpop.permute.xlu0 %927
    %v930 = vadd.f32 %v920, %v928
    %v931 = vtanh.pop %v930
    %933 = vrot.lane.b32.xlu0 %v931, 64
    %v934 = vpop.permute.xlu0 %933
    %v936 = vmul.f32 %v919, %v934
    %v937 = vld [vmem:[#allocation3] sm:$0xff]
    %v938 = vld [vmem:[#allocation3 + $0x8] sm:$0xff]
    %v939 = vld [vmem:[#allocation3 + $0x10] sm:$0xff]
    %v940 = vld [vmem:[#allocation3 + $0x18] sm:$0xff]
    %v941 = vld [vmem:[#allocation3 + $0x20] sm:$0xff]
    %v942 = vld [vmem:[#allocation3 + $0x28] sm:$0xff]
    %v943 = vld [vmem:[#allocation3 + $0x30] sm:$0xff]
    %v944 = vld [vmem:[#allocation3 + $0x38] sm:$0xff]
    %v945 = vld [vmem:[%s5] sm:$0x1]
    %v947 = vlaneseq
    %v948 = vshrl.u32 %v947, 7
    %v949 = vsub.s32 0, %v948
    %v950 = vrot.slane %v945, %v949
    %v953 = vsel %vm253, %v936, 0
    %955 = vmatprep.subr.mxu0 0.0
    %956 = vmatpush1.msra.mxu0 %v937
    %957 = vmatprep.subr.mxu0 0.0
    %958 = vmatpush1.msra.mxu0 %v938
    %959 = vmatprep.subr.mxu0 0.0
    %960 = vmatpush1.msra.mxu0 %v939
    %961 = vmatprep.subr.mxu0 0.0
    %962 = vmatpush1.msra.mxu0 %v940
    %963 = vmatprep.subr.mxu0 0.0
    %964 = vmatpush1.msra.mxu0 %v941
    %965 = vmatprep.subr.mxu0 0.0
    %966 = vmatpush1.msra.mxu0 %v942
    %967 = vmatprep.subr.mxu0 0.0
    %968 = vmatpush1.msra.mxu0 %v943
    %969 = vmatprep.subr.mxu0 0.0
    %970 = vmatpush1.msra.mxu0 %v944
    %971 = vmatprep.subr.mxu0 0.0
    %972 = vmatpush1.msra.mxu0 0.0
    %973 = vmatprep.subr.mxu0 0.0
    %974 = vmatpush1.msra.mxu0 0.0
    %975 = vmatprep.subr.mxu0 0.0
    %976 = vmatpush1.msra.mxu0 0.0
    %977 = vmatprep.subr.mxu0 0.0
    %978 = vmatpush1.msra.mxu0 0.0
    %979 = vmatprep.subr.mxu0 0.0
    %980 = vmatpush1.msra.mxu0 0.0
    %981 = vmatprep.subr.mxu0 0.0
    %982 = vmatpush1.msra.mxu0 0.0
    %983 = vmatprep.subr.mxu0 0.0
    %984 = vmatpush1.msra.mxu0 0.0
    %985 = vmatprep.subr.mxu0 0.0
    %986 = vmatpush1.msra.mxu0 0.0
    %987 = vmatprep.subr.mxu0 0.0
    %988 = vmatpush1.msra.mxu0 0.0
    %989 = vmatprep.subr.mxu0 0.0
    %990 = vmatpush1.msra.mxu0 0.0
    %991 = vmatprep.subr.mxu0 0.0
    %992 = vmatpush1.msra.mxu0 0.0
    %993 = vmatprep.subr.mxu0 0.0
    %994 = vmatpush1.msra.mxu0 0.0
    %995 = vmatprep.subr.mxu0 0.0
    %996 = vmatpush1.msra.mxu0 0.0
    %997 = vmatprep.subr.mxu0 0.0
    %998 = vmatpush1.msra.mxu0 0.0
    %999 = vmatprep.subr.mxu0 0.0
    %1000 = vmatpush1.msra.mxu0 0.0
    %1001 = vmatprep.subr.mxu0 0.0
    %1002 = vmatpush1.msra.mxu0 0.0
    %1003 = vmatprep.subr.mxu0 0.0
    %1004 = vmatpush1.msra.mxu0 0.0
    %1005 = vmatprep.subr.mxu0 0.0
    %1006 = vmatpush1.msra.mxu0 0.0
    %1007 = vmatprep.subr.mxu0 0.0
    %1008 = vmatpush1.msra.mxu0 0.0
    %1009 = vmatprep.subr.mxu0 0.0
    %1010 = vmatpush1.msra.mxu0 0.0
    %1011 = vmatprep.subr.mxu0 0.0
    %1012 = vmatpush1.msra.mxu0 0.0
    %1013 = vmatprep.subr.mxu0 0.0
    %1014 = vmatpush1.msra.mxu0 0.0
    %1015 = vmatprep.subr.mxu0 0.0
    %1016 = vmatpush1.msra.mxu0 0.0
    %1017 = vmatprep.subr.mxu0 0.0
    %1018 = vmatpush1.msra.mxu0 0.0
    %1019 = vmatprep.mubr.f32.mxu0 0.0
    %1020 = vmatmul.mubr.f32.gmra.mrb[0].mxu0 %v953
    %v1021 = vpop.f32.mrb[0].mxu0
    %v1022 = vadd.f32 %v950, %v1021
    %v1023 = vpop.f32.mrb[0].mxu0
    %1024 = vdwg.mxu0
    %v1025 = vtanh.pop %v1022
    %v1026 = vmul.f32 %v1025, 0.5
    %v1027 = vadd.f32 %v1026, 0.5
    %1029 = vrot.lane.b32.xlu0 %v930, 64
    %v1030 = vpop.permute.xlu0 %1029
    %v1032 = vmul.f32 %v1027, %v1030
    %1034 = vrot.lane.b32.xlu0 %v1025, 32
    %v1035 = vpop.permute.xlu0 %1034
    %v1037 = vmul.f32 %v1027, %v1035
    %1039 = vrot.lane.b32.xlu0 %v1037, 32
    %v1040 = vpop.permute.xlu0 %1039
    %v1042 = vadd.f32 %v1032, %v1040
    %v1043 = vtanh.pop %v1042
    %1045 = vrot.lane.b32.xlu0 %v1043, 32
    %v1046 = vpop.permute.xlu0 %1045
    %v1048 = vmul.f32 %v1027, %v1046
    %v1049 = vld [vmem:[%s6] sm:$0x1]
    %v1051 = vlaneseq
    %v1052 = vshrl.u32 %v1051, 7
    %v1053 = vsub.s32 0, %v1052
    %v1054 = vrot.slane %v1049, %v1053
    %1055 = vrot.lane.b32.xlu0 %v1054, 64
    %v1056 = vpop.permute.xlu0 %1055
    %v1058 = vmul.f32 %v1048, %v1056
    %1060 = vrot.lane.b32.xlu0 %v1058, 64
    %v1061 = vpop.permute.xlu0 %1060
    %vm1063 = vcmask 261120
    %v1064 = vsel %vm1063, %v1061, 0.0
    %1065 = vadd.xlane.f32.xlu0 %v1064
    %v1066 = vpop.xlane.xlu0 %1065
    %v1067 = vld [vmem:[#allocation2] sm:$0x1]
    %v1069 = vlaneseq
    %v1070 = vshrl.u32 %v1069, 7
    %v1071 = vsub.s32 0, %v1070
    %v1072 = vrot.slane %v1067, %v1071
    %v1074 = vadd.f32 %v1066, %v1072
    %vm1075 = vcmask 7168
    %1076 = vst.msk [vmem:[%s8] sm:$0xff] %vm1075, %v1074
    // Predicated region
    $region38: #{stock_forecast_lstm.1} parent=1 // pred_check
      _
    $region39: #{stock_forecast_lstm.1} parent=1 // pred_check_branch
      %1078 = sbr.rel (0) target = $region41
    $region40: #{stock_forecast_lstm.1} parent=1 // pred_region
      _
    $region41: #{stock_forecast_lstm.1} parent=1 // pred_fallthru
      _
    // Predicated region
    $region42: #{stock_forecast_lstm.1} parent=1 // pred_check
      _
    $region43: #{stock_forecast_lstm.1} parent=1 // pred_check_branch
      %1080 = sbr.rel (0) target = $region45
    $region44: #{stock_forecast_lstm.1} parent=1 // pred_region
      _
    $region45: #{stock_forecast_lstm.1} parent=1 // pred_fallthru
      _
    %1081 = vsyncpa [#allocation4], 1

</llo_original>
